<compile_context>
chip_gen: v7x
topology: tpu7x:2x2x1
jax: 0.10.0
libtpu: 0.0.40
codegen_flags: <defaults>
</compile_context>

<pallas_src>
import jax
import jax.numpy as jnp
from jax.experimental import pallas as pl
from jax.experimental.pallas import tpu as pltpu

HIDDEN2 = 64


def _round_up(x, m):
    return ((x + m - 1) // m) * m


def _critic_kernel(state_ref, action_ref,     # (n_s, tb), (n_a, tb)  pipelined
                   w1s_ref, w1a_ref,          # (H, n_s), (H, n_a)    resident
                   w23_ref,                   # (2, H, H)             resident
                   bw_ref,                    # (H, 4) = [b1|b2|b3|w4] resident
                   b4_ref,                    # (1, 1) scalar in SMEM
                   out_ref):                  # (1, tb)               pipelined
    """One batch tile (feature-major): 3x (MXU matmul + bias + ReLU) then a
    VPU multiply + sublane reduction for the (64 -> 1) head."""
    s = state_ref[...].astype(jnp.float32)    # (n_s, tb)
    a = action_ref[...].astype(jnp.float32)   # (n_a, tb)

    bw = bw_ref[...]
    b1 = bw[:, 0:1]                            # (H, 1) — broadcast over lanes
    b2 = bw[:, 1:2]
    b3 = bw[:, 2:3]
    w4 = bw[:, 3:4]

    # Layer 1 — fused "concat": split W1 into state/action halves, accumulate.
    h = (jnp.dot(w1s_ref[...], s, preferred_element_type=jnp.float32)
         + jnp.dot(w1a_ref[...], a, preferred_element_type=jnp.float32)
         + b1)
    h = jnp.maximum(h, 0.0)                    # (H, tb)

    h = jnp.dot(w23_ref[0], h, preferred_element_type=jnp.float32) + b2
    h = jnp.maximum(h, 0.0)

    h = jnp.dot(w23_ref[1], h, preferred_element_type=jnp.float32) + b3
    h = jnp.maximum(h, 0.0)

    # Head (64 -> 1): elementwise multiply by the (H,1) weight column and
    # reduce over the sublane axis -> lane-dense (1, tb) row.
    q = jnp.sum(h * w4, axis=0, keepdims=True) + b4_ref[0, 0]
    out_ref[...] = q.astype(out_ref.dtype)


def critic_forward(state, action, params, *, block_b=8192):
    """state: (B, n_states), action: (B, action_dim) -> (B, 1) Q-values."""
    w1, b1, w2, b2, w3, b3, w4, b4 = params
    B, n_s = state.shape
    n_a = action.shape[1]
    n_in = n_s + n_a
    H = w2.shape[0]

    # ---- feature-major operands (pure layout plumbing; a real DDPG step can
    #      keep activations feature-major end-to-end and skip these transposes).
    state_t = state.T                          # (n_s, B)
    action_t = action.T                        # (n_a, B)
    w1s_t = w1[:n_s].T                         # (H, n_s)  state half of W1
    w1a_t = w1[n_s:].T                         # (H, n_a)  action half of W1
    w23_t = jnp.stack([w2.T, w3.T])            # (2, H, H)
    bw = jnp.concatenate([b1.reshape(H, 1), b2.reshape(H, 1),
                          b3.reshape(H, 1), w4.reshape(H, 1)], axis=1)  # (H, 4)
    b4_s = b4.reshape(1, 1)                    # scalar -> SMEM

    # ---- batch tiling on the lane axis.
    block_b = max(128, _round_up(int(block_b), 128))
    if B <= block_b and B <= 512:
        tb = B                                 # single full-extent block
    else:
        # >=2 grid steps (both TensorCores busy on v7x), lane-aligned tiles;
        # the tail tile is handled by Pallas bounds-masking (no jnp.pad copy).
        tb = min(block_b, _round_up(pl.cdiv(B, 2), 128))
    grid = (pl.cdiv(B, tb),)

    # Weights / biases: full-array blocks with constant index_maps so they are
    # fetched once and stay VMEM-resident across the whole grid.
    in_specs = [
        pl.BlockSpec((n_s, tb), lambda i: (0, i)),       # state tile (pipelined)
        pl.BlockSpec((n_a, tb), lambda i: (0, i)),       # action tile (pipelined)
        pl.BlockSpec((H, n_s), lambda i: (0, 0)),        # W1 state half
        pl.BlockSpec((H, n_a), lambda i: (0, 0)),        # W1 action half
        pl.BlockSpec((2, H, H), lambda i: (0, 0, 0)),    # packed W2/W3
        pl.BlockSpec((H, 4), lambda i: (0, 0)),          # packed b1/b2/b3/w4
        pl.BlockSpec(memory_space=pltpu.MemorySpace.SMEM),  # b4 scalar
    ]

    flops = 2 * B * (n_in * H + 2 * H * H + H)
    weight_bytes = 4 * (n_in * H + 2 * H * H + 4 * H + 1)
    bytes_accessed = 4 * B * (n_in + 1) + weight_bytes

    out = pl.pallas_call(
        _critic_kernel,
        out_shape=jax.ShapeDtypeStruct((1, B), jnp.float32),
        grid=grid,
        in_specs=in_specs,
        out_specs=pl.BlockSpec((1, tb), lambda i: (0, i)),
        compiler_params=pltpu.CompilerParams(
            # Batch tiles are independent -> shard grid across TensorCores on
            # v7x; measured no-op on single-TC v5e/v6e.
            dimension_semantics=("parallel",),
            # Explicit VMEM budget; footprint at tb=8192 is well under this and
            # it stays below v7x's 64 MiB/TC physical ceiling.
            vmem_limit_bytes=32 * 1024 * 1024),
        cost_estimate=pl.CostEstimate(flops=flops,
                                      bytes_accessed=bytes_accessed,
                                      transcendentals=0),
    )(state_t, action_t, w1s_t, w1a_t, w23_t, bw, b4_s)

    # (1, B) lane-dense row -> (B, 1) column expected by the caller.
    return out.reshape(B, 1)


def init_critic_params(key, n_states, action_dim, hidden2=HIDDEN2):
    """Deterministic init matching PyTorch nn.Linear default U(-1/sqrt(fan_in), .).
    Weights are stored as (in, out) — i.e. the transpose of PyTorch's (out, in)."""
    dims = [(n_states + action_dim, hidden2),
            (hidden2, hidden2),
            (hidden2, hidden2),
            (hidden2, 1)]
    params = []
    for (fan_in, fan_out) in dims:
        key, kw, kb = jax.random.split(key, 3)
        bound = 1.0 / jnp.sqrt(fan_in)
        w = jax.random.uniform(kw, (fan_in, fan_out), jnp.float32, -bound, bound)
        b = jax.random.uniform(kb, (1, fan_out), jnp.float32, -bound, bound)
        params += [w, b]
    return tuple(params)


def critic_reference(state, action, params):
    """Pure-JAX reference for validation."""
    w1, b1, w2, b2, w3, b3, w4, b4 = params
    x = jnp.concatenate([state, action], axis=1)
    x = jnp.maximum(x @ w1 + b1, 0.0)
    x = jnp.maximum(x @ w2 + b2, 0.0)
    x = jnp.maximum(x @ w3 + b3, 0.0)
    return x @ w4 + b4


if __name__ == "__main__":
    key = jax.random.PRNGKey(0)
    n_states, action_dim, batch = 8, 4, 16

    kp, ks, ka = jax.random.split(key, 3)
    params = init_critic_params(kp, n_states, action_dim, HIDDEN2)
    state = jax.random.normal(ks, (batch, n_states), jnp.float32)
    action = jax.random.normal(ka, (batch, action_dim), jnp.float32)

    # Case 1: tiny batch -> single full-extent block.
    q = jax.block_until_ready(critic_forward(state, action, params))
    q_ref = critic_reference(state, action, params)
    assert q.shape == (batch, 1), q.shape
    assert jnp.allclose(q, q_ref, atol=1e-5, rtol=1e-5), (q, q_ref)

    # Case 2: multi-tile pipelined grid with a non-divisible tail
    # (batch=300, tb=128 -> 3 grid steps; tail-tile output writes are
    # bounds-masked, OOB input reads are harmless since rows are independent).
    batch2 = 300
    ks2, ka2 = jax.random.split(jax.random.PRNGKey(1), 2)
    state2 = jax.random.normal(ks2, (batch2, n_states), jnp.float32)
    action2 = jax.random.normal(ka2, (batch2, action_dim), jnp.float32)
    q2 = jax.block_until_ready(critic_forward(state2, action2, params, block_b=128))
    q2_ref = critic_reference(state2, action2, params)
    assert q2.shape == (batch2, 1), q2.shape
    assert jnp.allclose(q2, q2_ref, atol=1e-5, rtol=1e-5), (q2, q2_ref)

    print("KERNEL_OK")
</pallas_src>

<mosaic_0001>
module attributes {stable_mosaic.version = 11 : i64} {
  func.func @_critic_kernel(%arg0: i32, %arg1: memref<8x16xf32, #tpu.memory_space<vmem>>, %arg2: memref<4x16xf32, #tpu.memory_space<vmem>>, %arg3: memref<64x8xf32, #tpu.memory_space<vmem>>, %arg4: memref<64x4xf32, #tpu.memory_space<vmem>>, %arg5: memref<2x64x64xf32, #tpu.memory_space<vmem>>, %arg6: memref<64x4xf32, #tpu.memory_space<vmem>>, %arg7: memref<1x1xf32, #tpu.memory_space<smem>>, %arg8: memref<1x16xf32, #tpu.memory_space<vmem>>) attributes {dimension_semantics = [#tpu.dimension_semantics<parallel>], iteration_bounds = array<i64: 1>, scalar_prefetch = 0 : i64, scratch_operands = 0 : i64, tpu.core_type = #tpu.core_type<tc>, window_params = [{transform_indices = @transform_0, window_bounds = array<i64: 8, 16>}, {transform_indices = @transform_1, window_bounds = array<i64: 4, 16>}, {pipeline_mode = #tpu.pipeline_mode<synchronous>, transform_indices = @transform_2, window_bounds = array<i64: 64, 8>}, {pipeline_mode = #tpu.pipeline_mode<synchronous>, transform_indices = @transform_3, window_bounds = array<i64: 64, 4>}, {pipeline_mode = #tpu.pipeline_mode<synchronous>, transform_indices = @transform_4, window_bounds = array<i64: 2, 64, 64>}, {pipeline_mode = #tpu.pipeline_mode<synchronous>, transform_indices = @transform_5, window_bounds = array<i64: 64, 4>}, {transform_indices = @transform_6, window_bounds = array<i64: 1, 1>}, {transform_indices = @transform_7, window_bounds = array<i64: 1, 16>}]} {
    %c0 = arith.constant 0 : index
    %c0_0 = arith.constant 0 : index
    %0 = vector.load %arg1[%c0, %c0_0] : memref<8x16xf32, #tpu.memory_space<vmem>>, vector<8x16xf32>
    %c0_1 = arith.constant 0 : index
    %c0_2 = arith.constant 0 : index
    %1 = vector.load %arg2[%c0_1, %c0_2] : memref<4x16xf32, #tpu.memory_space<vmem>>, vector<4x16xf32>
    %c0_3 = arith.constant 0 : index
    %c0_4 = arith.constant 0 : index
    %2 = vector.load %arg6[%c0_3, %c0_4] : memref<64x4xf32, #tpu.memory_space<vmem>>, vector<64x4xf32>
    %3 = vector.extract_strided_slice %2 {offsets = [0, 0], sizes = [64, 1], strides = [1, 1]} : vector<64x4xf32> to vector<64x1xf32>
    %4 = vector.extract_strided_slice %2 {offsets = [0, 1], sizes = [64, 1], strides = [1, 1]} : vector<64x4xf32> to vector<64x1xf32>
    %5 = vector.extract_strided_slice %2 {offsets = [0, 2], sizes = [64, 1], strides = [1, 1]} : vector<64x4xf32> to vector<64x1xf32>
    %6 = vector.extract_strided_slice %2 {offsets = [0, 3], sizes = [64, 1], strides = [1, 1]} : vector<64x4xf32> to vector<64x1xf32>
    %c0_5 = arith.constant 0 : index
    %c0_6 = arith.constant 0 : index
    %7 = vector.load %arg3[%c0_5, %c0_6] : memref<64x8xf32, #tpu.memory_space<vmem>>, vector<64x8xf32>
    %cst = arith.constant dense<0.000000e+00> : vector<64x16xf32>
    %8 = tpu.matmul %7, %0, %cst {dimension_numbers = #tpu.dot_dimension_numbers<[1], [0], [0], [1], [0, 0, 1, 1], [], []>} : vector<64x8xf32>, vector<8x16xf32>, vector<64x16xf32> -> vector<64x16xf32>
    %c0_7 = arith.constant 0 : index
    %c0_8 = arith.constant 0 : index
    %9 = vector.load %arg4[%c0_7, %c0_8] : memref<64x4xf32, #tpu.memory_space<vmem>>, vector<64x4xf32>
    %cst_9 = arith.constant dense<0.000000e+00> : vector<64x16xf32>
    %10 = tpu.matmul %9, %1, %cst_9 {dimension_numbers = #tpu.dot_dimension_numbers<[1], [0], [0], [1], [0, 0, 1, 1], [], []>} : vector<64x4xf32>, vector<4x16xf32>, vector<64x16xf32> -> vector<64x16xf32>
    %11 = arith.addf %8, %10 : vector<64x16xf32>
    %12 = vector.broadcast %3 : vector<64x1xf32> to vector<64x16xf32>
    %13 = arith.addf %11, %12 : vector<64x16xf32>
    %cst_10 = arith.constant 0.000000e+00 : f32
    %14 = vector.broadcast %cst_10 : f32 to vector<64x16xf32>
    %15 = arith.maximumf %13, %14 : vector<64x16xf32>
    %c0_11 = arith.constant 0 : index
    %c0_12 = arith.constant 0 : index
    %c0_13 = arith.constant 0 : index
    %16 = vector.load %arg5[%c0_11, %c0_12, %c0_13] : memref<2x64x64xf32, #tpu.memory_space<vmem>>, vector<1x64x64xf32>
    %17 = vector.shape_cast %16 : vector<1x64x64xf32> to vector<64x64xf32>
    %cst_14 = arith.constant dense<0.000000e+00> : vector<64x16xf32>
    %18 = tpu.matmul %17, %15, %cst_14 {dimension_numbers = #tpu.dot_dimension_numbers<[1], [0], [0], [1], [0, 0, 1, 1], [], []>} : vector<64x64xf32>, vector<64x16xf32>, vector<64x16xf32> -> vector<64x16xf32>
    %19 = vector.broadcast %4 : vector<64x1xf32> to vector<64x16xf32>
    %20 = arith.addf %18, %19 : vector<64x16xf32>
    %cst_15 = arith.constant 0.000000e+00 : f32
    %21 = vector.broadcast %cst_15 : f32 to vector<64x16xf32>
    %22 = arith.maximumf %20, %21 : vector<64x16xf32>
    %c1 = arith.constant 1 : index
    %c0_16 = arith.constant 0 : index
    %c0_17 = arith.constant 0 : index
    %23 = vector.load %arg5[%c1, %c0_16, %c0_17] : memref<2x64x64xf32, #tpu.memory_space<vmem>>, vector<1x64x64xf32>
    %24 = vector.shape_cast %23 : vector<1x64x64xf32> to vector<64x64xf32>
    %cst_18 = arith.constant dense<0.000000e+00> : vector<64x16xf32>
    %25 = tpu.matmul %24, %22, %cst_18 {dimension_numbers = #tpu.dot_dimension_numbers<[1], [0], [0], [1], [0, 0, 1, 1], [], []>} : vector<64x64xf32>, vector<64x16xf32>, vector<64x16xf32> -> vector<64x16xf32>
    %26 = vector.broadcast %5 : vector<64x1xf32> to vector<64x16xf32>
    %27 = arith.addf %25, %26 : vector<64x16xf32>
    %cst_19 = arith.constant 0.000000e+00 : f32
    %28 = vector.broadcast %cst_19 : f32 to vector<64x16xf32>
    %29 = arith.maximumf %27, %28 : vector<64x16xf32>
    %30 = vector.broadcast %6 : vector<64x1xf32> to vector<64x16xf32>
    %31 = arith.mulf %29, %30 : vector<64x16xf32>
    %cst_20 = arith.constant dense<0.000000e+00> : vector<16xf32>
    %32 = vector.multi_reduction <add>, %31, %cst_20 [0] : vector<64x16xf32> to vector<16xf32>
    %33 = vector.shape_cast %32 : vector<16xf32> to vector<1x16xf32>
    %c0_21 = arith.constant 0 : index
    %c0_22 = arith.constant 0 : index
    %34 = memref.load %arg7[%c0_21, %c0_22] : memref<1x1xf32, #tpu.memory_space<smem>>
    %35 = vector.broadcast %34 : f32 to vector<1x16xf32>
    %36 = arith.addf %33, %35 : vector<1x16xf32>
    %c0_23 = arith.constant 0 : index
    %c0_24 = arith.constant 0 : index
    %37 = vector.load %arg8[%c0_23, %c0_24] : memref<1x16xf32, #tpu.memory_space<vmem>>, vector<1x16xf32>
    tpu.vector_store %arg8[%c0_23, %c0_24], %36 {strides = array<i32>} : memref<1x16xf32, #tpu.memory_space<vmem>>, vector<1x16xf32>,
    return
  }
  func.func @transform_0(%arg0: i32) -> (i32, i32) {
    %c0_i32 = arith.constant 0 : i32
    %c0_i32_0 = arith.constant 0 : i32
    return %c0_i32, %arg0 : i32, i32
  }
  func.func @transform_1(%arg0: i32) -> (i32, i32) {
    %c0_i32 = arith.constant 0 : i32
    %c0_i32_0 = arith.constant 0 : i32
    return %c0_i32, %arg0 : i32, i32
  }
  func.func @transform_2(%arg0: i32) -> (i32, i32) {
    %c0_i32 = arith.constant 0 : i32
    %c0_i32_0 = arith.constant 0 : i32
    %c0_i32_1 = arith.constant 0 : i32
    return %c0_i32, %c0_i32_0 : i32, i32
  }
  func.func @transform_3(%arg0: i32) -> (i32, i32) {
    %c0_i32 = arith.constant 0 : i32
    %c0_i32_0 = arith.constant 0 : i32
    %c0_i32_1 = arith.constant 0 : i32
    return %c0_i32, %c0_i32_0 : i32, i32
  }
  func.func @transform_4(%arg0: i32) -> (i32, i32, i32) {
    %c0_i32 = arith.constant 0 : i32
    %c0_i32_0 = arith.constant 0 : i32
    %c0_i32_1 = arith.constant 0 : i32
    %c0_i32_2 = arith.constant 0 : i32
    return %c0_i32, %c0_i32_0, %c0_i32_1 : i32, i32, i32
  }
  func.func @transform_5(%arg0: i32) -> (i32, i32) {
    %c0_i32 = arith.constant 0 : i32
    %c0_i32_0 = arith.constant 0 : i32
    %c0_i32_1 = arith.constant 0 : i32
    return %c0_i32, %c0_i32_0 : i32, i32
  }
  func.func @transform_6(%arg0: i32) -> (i32, i32) {
    %c0_i32 = arith.constant 0 : i32
    %c0_i32_0 = arith.constant 0 : i32
    %c0_i32_1 = arith.constant 0 : i32
    return %c0_i32, %c0_i32_0 : i32, i32
  }
  func.func @transform_7(%arg0: i32) -> (i32, i32) {
    %c0_i32 = arith.constant 0 : i32
    %c0_i32_0 = arith.constant 0 : i32
    return %c0_i32, %arg0 : i32, i32
  }
}

</mosaic_0001>

<llo_original>
// kernel: tpu_custom_call.1
$region0: #{tpu_custom_call.1}
  #allocation0 [shape = 'u32[]', space=smem, size = 0x4, offset = 0x4, fixed_abs, tag = 'smem constant byte address 0x4 - core index']
  #allocation1 [shape = 'u32[144,128]{1,0:T(1,128)}', space=vmem, size = 0x12000, scoped, tag = 'internal scratch']
  #allocation2 [shape = 'f32[1,1]{1,0:T(1,128)S(6)}', space=smem, size = 0x200, scoped, tag = 'scoped memory for tpu_custom_call.1']
  %s0 = inlined_call_operand.vmem [shape: f32[8,16], index: 0, kind: input, shape index: {}]
  %s1 = inlined_call_operand.vmem [shape: f32[4,16], index: 1, kind: input, shape index: {}]
  %s2 = inlined_call_operand.vmem [shape: f32[64,8], index: 2, kind: input, shape index: {}]
  %s3 = inlined_call_operand.vmem [shape: f32[64,4], index: 3, kind: input, shape index: {}]
  %s4 = inlined_call_operand.vmem [shape: f32[2,64,64], index: 4, kind: input, shape index: {}]
  %s5 = inlined_call_operand.vmem [shape: f32[64,4], index: 5, kind: input, shape index: {}]
  %s6 = inlined_call_operand.<no memory space> [shape: f32[1,1], index: 6, kind: input, shape index: {}]
  %s7 = inlined_call_operand.hbm [shape: f32[1,16], index: 7, kind: output, shape index: {}]
  %s8 = sld [smem:[#allocation0]]
  $region38: #{tpu_custom_call.1} parent=0
    _
  %s10 = ssub.s32 1, %s8
  %s11 = scalar_select 0, %s10, %s8
  %12 = sst [smem:[#allocation2]] %s6
  $region1: #{tpu_custom_call.1} parent=0
    #allocation3 [shape = 'u8[512]{0}', space=vmem, size = 0x400, scoped, tag = 'output window, operand 0, single buffered']
    #allocation4 [shape = 's32[1]{0}', space=sflag, size = 0x4, scoped, tag = 'scoped memory for tpu_custom_call.1']
    %13 = vsyncpa [#allocation4], 0
    // Predicated region
    $region2: #{tpu_custom_call.1} parent=1 // pred_check
      _
    $region3: #{tpu_custom_call.1} parent=1 // pred_check_branch
      %15 = sbr.rel (0) target = $region5
    $region4: #{tpu_custom_call.1} parent=1 // pred_region
      _
    $region5: #{tpu_custom_call.1} parent=1 // pred_fallthru
      _
    // Predicated region
    $region6: #{tpu_custom_call.1} parent=1 // pred_check
      _
    $region7: #{tpu_custom_call.1} parent=1 // pred_check_branch
      %17 = sbr.rel (0) target = $region9
    $region8: #{tpu_custom_call.1} parent=1 // pred_region
      _
    $region9: #{tpu_custom_call.1} parent=1 // pred_fallthru
      _
    // Predicated region
    $region10: #{tpu_custom_call.1} parent=1 // pred_check
      _
    $region11: #{tpu_custom_call.1} parent=1 // pred_check_branch
      %19 = sbr.rel (0) target = $region13
    $region12: #{tpu_custom_call.1} parent=1 // pred_region
      _
    $region13: #{tpu_custom_call.1} parent=1 // pred_fallthru
      _
    // Predicated region
    $region14: #{tpu_custom_call.1} parent=1 // pred_check
      _
    $region15: #{tpu_custom_call.1} parent=1 // pred_check_branch
      %21 = sbr.rel (0) target = $region17
    $region16: #{tpu_custom_call.1} parent=1 // pred_region
      _
    $region17: #{tpu_custom_call.1} parent=1 // pred_fallthru
      _
    // Predicated region
    $region18: #{tpu_custom_call.1} parent=1 // pred_check
      _
    $region19: #{tpu_custom_call.1} parent=1 // pred_check_branch
      %23 = sbr.rel (0) target = $region21
    $region20: #{tpu_custom_call.1} parent=1 // pred_region
      _
    $region21: #{tpu_custom_call.1} parent=1 // pred_fallthru
      _
    // Predicated region
    $region22: #{tpu_custom_call.1} parent=1 // pred_check
      _
    $region23: #{tpu_custom_call.1} parent=1 // pred_check_branch
      %25 = sbr.rel (0) target = $region25
    $region24: #{tpu_custom_call.1} parent=1 // pred_region
      _
    $region25: #{tpu_custom_call.1} parent=1 // pred_fallthru
      _
    // Predicated region
    $region26: #{tpu_custom_call.1} parent=1 // pred_check
      _
    $region27: #{tpu_custom_call.1} parent=1 // pred_check_branch
      %27 = sbr.rel (0) target = $region29
    $region28: #{tpu_custom_call.1} parent=1 // pred_region
      _
    $region29: #{tpu_custom_call.1} parent=1 // pred_fallthru
      _
    %v28 = vld [vmem:[%s0] sm:$0xff]
    %v29 = vld [vmem:[%s1] sm:$0xf]
    %v30 = vld [vmem:[%s5] sm:$0xff]
    %v31 = vld [vmem:[%s5 + $0x8] sm:$0xff]
    %v32 = vld [vmem:[%s5 + $0x10] sm:$0xff]
    %v33 = vld [vmem:[%s5 + $0x18] sm:$0xff]
    %v34 = vld [vmem:[%s5 + $0x20] sm:$0xff]
    %v35 = vld [vmem:[%s5 + $0x28] sm:$0xff]
    %v36 = vld [vmem:[%s5 + $0x30] sm:$0xff]
    %v37 = vld [vmem:[%s5 + $0x38] sm:$0xff]
    %v38 = vld [vmem:[%s2] sm:$0xff]
    %v39 = vld [vmem:[%s2 + $0x8] sm:$0xff]
    %v40 = vld [vmem:[%s2 + $0x10] sm:$0xff]
    %v41 = vld [vmem:[%s2 + $0x18] sm:$0xff]
    %v42 = vld [vmem:[%s2 + $0x20] sm:$0xff]
    %v43 = vld [vmem:[%s2 + $0x28] sm:$0xff]
    %v44 = vld [vmem:[%s2 + $0x30] sm:$0xff]
    %v45 = vld [vmem:[%s2 + $0x38] sm:$0xff]
    %v46 = vld [vmem:[%s3] sm:$0xff]
    %v47 = vld [vmem:[%s3 + $0x8] sm:$0xff]
    %v48 = vld [vmem:[%s3 + $0x10] sm:$0xff]
    %v49 = vld [vmem:[%s3 + $0x18] sm:$0xff]
    %v50 = vld [vmem:[%s3 + $0x20] sm:$0xff]
    %v51 = vld [vmem:[%s3 + $0x28] sm:$0xff]
    %v52 = vld [vmem:[%s3 + $0x30] sm:$0xff]
    %v53 = vld [vmem:[%s3 + $0x38] sm:$0xff]
    %vm54 = vcmask 31744
    %v56 = vsel %vm54, %v46, 0
    %v59 = vsel %vm54, %v47, 0
    %v62 = vsel %vm54, %v48, 0
    %v65 = vsel %vm54, %v49, 0
    %v68 = vsel %vm54, %v50, 0
    %v71 = vsel %vm54, %v51, 0
    %v74 = vsel %vm54, %v52, 0
    %v77 = vsel %vm54, %v53, 0
    %vm79 = vcmask 1043456
    %v81 = vsel %vm79, %v29, 0
    %83 = vmatprep.subr.mxu0 0.0
    %84 = vmatpush1.msra.mxu0 %v81
    %85 = vmatprep.subr.mxu0 0.0
    %86 = vmatpush1.msra.mxu0 0.0
    %87 = vmatprep.subr.mxu0 0.0
    %88 = vmatpush1.msra.mxu0 0.0
    %89 = vmatprep.subr.mxu0 0.0
    %90 = vmatpush1.msra.mxu0 0.0
    %91 = vmatprep.subr.mxu0 0.0
    %92 = vmatpush1.msra.mxu0 0.0
    %93 = vmatprep.subr.mxu0 0.0
    %94 = vmatpush1.msra.mxu0 0.0
    %95 = vmatprep.subr.mxu0 0.0
    %96 = vmatpush1.msra.mxu0 0.0
    %97 = vmatprep.subr.mxu0 0.0
    %98 = vmatpush1.msra.mxu0 0.0
    %99 = vmatprep.subr.mxu0 0.0
    %100 = vmatpush1.msra.mxu0 0.0
    %101 = vmatprep.subr.mxu0 0.0
    %102 = vmatpush1.msra.mxu0 0.0
    %103 = vmatprep.subr.mxu0 0.0
    %104 = vmatpush1.msra.mxu0 0.0
    %105 = vmatprep.subr.mxu0 0.0
    %106 = vmatpush1.msra.mxu0 0.0
    %107 = vmatprep.subr.mxu0 0.0
    %108 = vmatpush1.msra.mxu0 0.0
    %109 = vmatprep.subr.mxu0 0.0
    %110 = vmatpush1.msra.mxu0 0.0
    %111 = vmatprep.subr.mxu0 0.0
    %112 = vmatpush1.msra.mxu0 0.0
    %113 = vmatprep.subr.mxu0 0.0
    %114 = vmatpush1.msra.mxu0 0.0
    %115 = vmatprep.subr.mxu0 0.0
    %116 = vmatpush1.msra.mxu0 0.0
    %117 = vmatprep.subr.mxu0 0.0
    %118 = vmatpush1.msra.mxu0 0.0
    %119 = vmatprep.subr.mxu0 0.0
    %120 = vmatpush1.msra.mxu0 0.0
    %121 = vmatprep.subr.mxu0 0.0
    %122 = vmatpush1.msra.mxu0 0.0
    %123 = vmatprep.subr.mxu0 0.0
    %124 = vmatpush1.msra.mxu0 0.0
    %125 = vmatprep.subr.mxu0 0.0
    %126 = vmatpush1.msra.mxu0 0.0
    %127 = vmatprep.subr.mxu0 0.0
    %128 = vmatpush1.msra.mxu0 0.0
    %129 = vmatprep.subr.mxu0 0.0
    %130 = vmatpush1.msra.mxu0 0.0
    %131 = vmatprep.subr.mxu0 0.0
    %132 = vmatpush1.msra.mxu0 0.0
    %133 = vmatprep.subr.mxu0 0.0
    %134 = vmatpush1.msra.mxu0 0.0
    %135 = vmatprep.subr.mxu0 0.0
    %136 = vmatpush1.msra.mxu0 0.0
    %137 = vmatprep.subr.mxu0 0.0
    %138 = vmatpush1.msra.mxu0 0.0
    %139 = vmatprep.subr.mxu0 0.0
    %140 = vmatpush1.msra.mxu0 0.0
    %141 = vmatprep.subr.mxu0 0.0
    %142 = vmatpush1.msra.mxu0 0.0
    %143 = vmatprep.subr.mxu0 0.0
    %144 = vmatpush1.msra.mxu0 0.0
    %145 = vmatprep.subr.mxu0 0.0
    %146 = vmatpush1.msra.mxu0 0.0
    %147 = vmatprep.mubr.f32.mxu0 0.0
    %148 = vmatmul.mubr.f32.gmra.mrb[0].mxu0 %v56
    %v149 = vpop.f32.mrb[0].mxu0
    %v150 = vadd.f32 0.0, %v149
    %v151 = vpop.f32.mrb[0].mxu0
    %152 = vmatprep.mubr.f32.mxu0 0.0
    %153 = vmatmul.mubr.f32.gmra.mrb[0].mxu0 %v59
    %v154 = vpop.f32.mrb[0].mxu0
    %v155 = vadd.f32 0.0, %v154
    %v156 = vpop.f32.mrb[0].mxu0
    %157 = vmatprep.mubr.f32.mxu0 0.0
    %158 = vmatmul.mubr.f32.gmra.mrb[0].mxu0 %v62
    %v159 = vpop.f32.mrb[0].mxu0
    %v160 = vadd.f32 0.0, %v159
    %v161 = vpop.f32.mrb[0].mxu0
    %162 = vmatprep.mubr.f32.mxu0 0.0
    %163 = vmatmul.mubr.f32.gmra.mrb[0].mxu0 %v65
    %v164 = vpop.f32.mrb[0].mxu0
    %v165 = vadd.f32 0.0, %v164
    %v166 = vpop.f32.mrb[0].mxu0
    %167 = vmatprep.mubr.f32.mxu0 0.0
    %168 = vmatmul.mubr.f32.gmra.mrb[0].mxu0 %v68
    %v169 = vpop.f32.mrb[0].mxu0
    %v170 = vadd.f32 0.0, %v169
    %v171 = vpop.f32.mrb[0].mxu0
    %172 = vmatprep.mubr.f32.mxu0 0.0
    %173 = vmatmul.mubr.f32.gmra.mrb[0].mxu0 %v71
    %v174 = vpop.f32.mrb[0].mxu0
    %v175 = vadd.f32 0.0, %v174
    %v176 = vpop.f32.mrb[0].mxu0
    %177 = vmatprep.mubr.f32.mxu0 0.0
    %178 = vmatmul.mubr.f32.gmra.mrb[0].mxu0 %v74
    %v179 = vpop.f32.mrb[0].mxu0
    %v180 = vadd.f32 0.0, %v179
    %v181 = vpop.f32.mrb[0].mxu0
    %182 = vmatprep.mubr.f32.mxu0 0.0
    %183 = vmatmul.mubr.f32.gmra.mrb[0].mxu0 %v77
    %v184 = vpop.f32.mrb[0].mxu0
    %v185 = vadd.f32 0.0, %v184
    %v186 = vpop.f32.mrb[0].mxu0
    %187 = vdwg.mxu0
    %vm188 = vcmask 64512
    %v190 = vsel %vm188, %v38, 0
    %v193 = vsel %vm188, %v39, 0
    %v196 = vsel %vm188, %v40, 0
    %v199 = vsel %vm188, %v41, 0
    %v202 = vsel %vm188, %v42, 0
    %v205 = vsel %vm188, %v43, 0
    %v208 = vsel %vm188, %v44, 0
    %v211 = vsel %vm188, %v45, 0
    %213 = vmatprep.subr.mxu0 0.0
    %214 = vmatpush1.msra.mxu0 %v28
    %215 = vmatprep.subr.mxu0 0.0
    %216 = vmatpush1.msra.mxu0 0.0
    %217 = vmatprep.subr.mxu0 0.0
    %218 = vmatpush1.msra.mxu0 0.0
    %219 = vmatprep.subr.mxu0 0.0
    %220 = vmatpush1.msra.mxu0 0.0
    %221 = vmatprep.subr.mxu0 0.0
    %222 = vmatpush1.msra.mxu0 0.0
    %223 = vmatprep.subr.mxu0 0.0
    %224 = vmatpush1.msra.mxu0 0.0
    %225 = vmatprep.subr.mxu0 0.0
    %226 = vmatpush1.msra.mxu0 0.0
    %227 = vmatprep.subr.mxu0 0.0
    %228 = vmatpush1.msra.mxu0 0.0
    %229 = vmatprep.subr.mxu0 0.0
    %230 = vmatpush1.msra.mxu0 0.0
    %231 = vmatprep.subr.mxu0 0.0
    %232 = vmatpush1.msra.mxu0 0.0
    %233 = vmatprep.subr.mxu0 0.0
    %234 = vmatpush1.msra.mxu0 0.0
    %235 = vmatprep.subr.mxu0 0.0
    %236 = vmatpush1.msra.mxu0 0.0
    %237 = vmatprep.subr.mxu0 0.0
    %238 = vmatpush1.msra.mxu0 0.0
    %239 = vmatprep.subr.mxu0 0.0
    %240 = vmatpush1.msra.mxu0 0.0
    %241 = vmatprep.subr.mxu0 0.0
    %242 = vmatpush1.msra.mxu0 0.0
    %243 = vmatprep.subr.mxu0 0.0
    %244 = vmatpush1.msra.mxu0 0.0
    %245 = vmatprep.subr.mxu0 0.0
    %246 = vmatpush1.msra.mxu0 0.0
    %247 = vmatprep.subr.mxu0 0.0
    %248 = vmatpush1.msra.mxu0 0.0
    %249 = vmatprep.subr.mxu0 0.0
    %250 = vmatpush1.msra.mxu0 0.0
    %251 = vmatprep.subr.mxu0 0.0
    %252 = vmatpush1.msra.mxu0 0.0
    %253 = vmatprep.subr.mxu0 0.0
    %254 = vmatpush1.msra.mxu0 0.0
    %255 = vmatprep.subr.mxu0 0.0
    %256 = vmatpush1.msra.mxu0 0.0
    %257 = vmatprep.subr.mxu0 0.0
    %258 = vmatpush1.msra.mxu0 0.0
    %259 = vmatprep.subr.mxu0 0.0
    %260 = vmatpush1.msra.mxu0 0.0
    %261 = vmatprep.subr.mxu0 0.0
    %262 = vmatpush1.msra.mxu0 0.0
    %263 = vmatprep.subr.mxu0 0.0
    %264 = vmatpush1.msra.mxu0 0.0
    %265 = vmatprep.subr.mxu0 0.0
    %266 = vmatpush1.msra.mxu0 0.0
    %267 = vmatprep.subr.mxu0 0.0
    %268 = vmatpush1.msra.mxu0 0.0
    %269 = vmatprep.subr.mxu0 0.0
    %270 = vmatpush1.msra.mxu0 0.0
    %271 = vmatprep.subr.mxu0 0.0
    %272 = vmatpush1.msra.mxu0 0.0
    %273 = vmatprep.subr.mxu0 0.0
    %274 = vmatpush1.msra.mxu0 0.0
    %275 = vmatprep.subr.mxu0 0.0
    %276 = vmatpush1.msra.mxu0 0.0
    %277 = vmatprep.mubr.f32.mxu0 0.0
    %278 = vmatmul.mubr.f32.gmra.mrb[0].mxu0 %v190
    %v279 = vpop.f32.mrb[0].mxu0
    %v280 = vadd.f32 %v150, %v279
    %v281 = vpop.f32.mrb[0].mxu0
    %282 = vmatprep.mubr.f32.mxu0 0.0
    %283 = vmatmul.mubr.f32.gmra.mrb[0].mxu0 %v193
    %v284 = vpop.f32.mrb[0].mxu0
    %v285 = vadd.f32 %v155, %v284
    %v286 = vpop.f32.mrb[0].mxu0
    %287 = vmatprep.mubr.f32.mxu0 0.0
    %288 = vmatmul.mubr.f32.gmra.mrb[0].mxu0 %v196
    %v289 = vpop.f32.mrb[0].mxu0
    %v290 = vadd.f32 %v160, %v289
    %v291 = vpop.f32.mrb[0].mxu0
    %292 = vmatprep.mubr.f32.mxu0 0.0
    %293 = vmatmul.mubr.f32.gmra.mrb[0].mxu0 %v199
    %v294 = vpop.f32.mrb[0].mxu0
    %v295 = vadd.f32 %v165, %v294
    %v296 = vpop.f32.mrb[0].mxu0
    %297 = vmatprep.mubr.f32.mxu0 0.0
    %298 = vmatmul.mubr.f32.gmra.mrb[0].mxu0 %v202
    %v299 = vpop.f32.mrb[0].mxu0
    %v300 = vadd.f32 %v170, %v299
    %v301 = vpop.f32.mrb[0].mxu0
    %302 = vmatprep.mubr.f32.mxu0 0.0
    %303 = vmatmul.mubr.f32.gmra.mrb[0].mxu0 %v205
    %v304 = vpop.f32.mrb[0].mxu0
    %v305 = vadd.f32 %v175, %v304
    %v306 = vpop.f32.mrb[0].mxu0
    %307 = vmatprep.mubr.f32.mxu0 0.0
    %308 = vmatmul.mubr.f32.gmra.mrb[0].mxu0 %v208
    %v309 = vpop.f32.mrb[0].mxu0
    %v310 = vadd.f32 %v180, %v309
    %v311 = vpop.f32.mrb[0].mxu0
    %312 = vmatprep.mubr.f32.mxu0 0.0
    %313 = vmatmul.mubr.f32.gmra.mrb[0].mxu0 %v211
    %v314 = vpop.f32.mrb[0].mxu0
    %v315 = vadd.f32 %v185, %v314
    %v316 = vpop.f32.mrb[0].mxu0
    %317 = vdwg.mxu0
    %319 = vset.pattern.permute.xlu0 0
    %320 = vperm.xlu0 %319, %v30
    %v321 = vpop.permute.xlu0 %320
    %324 = vset.pattern.permute.xlu0 0
    %325 = vperm.xlu0 %324, %v31
    %v326 = vpop.permute.xlu0 %325
    %329 = vset.pattern.permute.xlu0 0
    %330 = vperm.xlu0 %329, %v32
    %v331 = vpop.permute.xlu0 %330
    %334 = vset.pattern.permute.xlu0 0
    %335 = vperm.xlu0 %334, %v33
    %v336 = vpop.permute.xlu0 %335
    %339 = vset.pattern.permute.xlu0 0
    %340 = vperm.xlu0 %339, %v34
    %v341 = vpop.permute.xlu0 %340
    %344 = vset.pattern.permute.xlu0 0
    %345 = vperm.xlu0 %344, %v35
    %v346 = vpop.permute.xlu0 %345
    %349 = vset.pattern.permute.xlu0 0
    %350 = vperm.xlu0 %349, %v36
    %v351 = vpop.permute.xlu0 %350
    %354 = vset.pattern.permute.xlu0 0
    %355 = vperm.xlu0 %354, %v37
    %v356 = vpop.permute.xlu0 %355
    %v358 = vadd.f32 %v280, %v321
    %v359 = vadd.f32 %v285, %v326
    %v360 = vadd.f32 %v290, %v331
    %v361 = vadd.f32 %v295, %v336
    %v362 = vadd.f32 %v300, %v341
    %v363 = vadd.f32 %v305, %v346
    %v364 = vadd.f32 %v310, %v351
    %v365 = vadd.f32 %v315, %v356
    %v366 = vmax.f32 %v358, 0.0
    %v367 = vmax.f32 %v359, 0.0
    %v368 = vmax.f32 %v360, 0.0
    %v369 = vmax.f32 %v361, 0.0
    %v370 = vmax.f32 %v362, 0.0
    %v371 = vmax.f32 %v363, 0.0
    %v372 = vmax.f32 %v364, 0.0
    %v373 = vmax.f32 %v365, 0.0
    %v374 = vld [vmem:[%s4] sm:$0xff]
    %v375 = vld [vmem:[%s4 + $0x8] sm:$0xff]
    %v376 = vld [vmem:[%s4 + $0x10] sm:$0xff]
    %v377 = vld [vmem:[%s4 + $0x18] sm:$0xff]
    %v378 = vld [vmem:[%s4 + $0x20] sm:$0xff]
    %v379 = vld [vmem:[%s4 + $0x28] sm:$0xff]
    %v380 = vld [vmem:[%s4 + $0x30] sm:$0xff]
    %v381 = vld [vmem:[%s4 + $0x38] sm:$0xff]
    %382 = vset.pattern.permute.xlu0 1
    %383 = vperm.xlu0 %382, %v30
    %v384 = vpop.permute.xlu0 %383
    %386 = vset.pattern.permute.xlu0 1
    %387 = vperm.xlu0 %386, %v31
    %v388 = vpop.permute.xlu0 %387
    %390 = vset.pattern.permute.xlu0 1
    %391 = vperm.xlu0 %390, %v32
    %v392 = vpop.permute.xlu0 %391
    %394 = vset.pattern.permute.xlu0 1
    %395 = vperm.xlu0 %394, %v33
    %v396 = vpop.permute.xlu0 %395
    %398 = vset.pattern.permute.xlu0 1
    %399 = vperm.xlu0 %398, %v34
    %v400 = vpop.permute.xlu0 %399
    %402 = vset.pattern.permute.xlu0 1
    %403 = vperm.xlu0 %402, %v35
    %v404 = vpop.permute.xlu0 %403
    %406 = vset.pattern.permute.xlu0 1
    %407 = vperm.xlu0 %406, %v36
    %v408 = vpop.permute.xlu0 %407
    %410 = vset.pattern.permute.xlu0 1
    %411 = vperm.xlu0 %410, %v37
    %v412 = vpop.permute.xlu0 %411
    %vm414 = vcmask 523264
    %v416 = vsel %vm414, %v374, 0
    %v419 = vsel %vm414, %v375, 0
    %v422 = vsel %vm414, %v376, 0
    %v425 = vsel %vm414, %v377, 0
    %v428 = vsel %vm414, %v378, 0
    %v431 = vsel %vm414, %v379, 0
    %v434 = vsel %vm414, %v380, 0
    %v437 = vsel %vm414, %v381, 0
    %439 = vmatprep.subr.mxu0 0.0
    %440 = vmatpush1.msra.mxu0 %v366
    %441 = vmatprep.subr.mxu0 0.0
    %442 = vmatpush1.msra.mxu0 %v367
    %443 = vmatprep.subr.mxu0 0.0
    %444 = vmatpush1.msra.mxu0 %v368
    %445 = vmatprep.subr.mxu0 0.0
    %446 = vmatpush1.msra.mxu0 %v369
    %447 = vmatprep.subr.mxu0 0.0
    %448 = vmatpush1.msra.mxu0 %v370
    %449 = vmatprep.subr.mxu0 0.0
    %450 = vmatpush1.msra.mxu0 %v371
    %451 = vmatprep.subr.mxu0 0.0
    %452 = vmatpush1.msra.mxu0 %v372
    %453 = vmatprep.subr.mxu0 0.0
    %454 = vmatpush1.msra.mxu0 %v373
    %455 = vmatprep.subr.mxu0 0.0
    %456 = vmatpush1.msra.mxu0 0.0
    %457 = vmatprep.subr.mxu0 0.0
    %458 = vmatpush1.msra.mxu0 0.0
    %459 = vmatprep.subr.mxu0 0.0
    %460 = vmatpush1.msra.mxu0 0.0
    %461 = vmatprep.subr.mxu0 0.0
    %462 = vmatpush1.msra.mxu0 0.0
    %463 = vmatprep.subr.mxu0 0.0
    %464 = vmatpush1.msra.mxu0 0.0
    %465 = vmatprep.subr.mxu0 0.0
    %466 = vmatpush1.msra.mxu0 0.0
    %467 = vmatprep.subr.mxu0 0.0
    %468 = vmatpush1.msra.mxu0 0.0
    %469 = vmatprep.subr.mxu0 0.0
    %470 = vmatpush1.msra.mxu0 0.0
    %471 = vmatprep.subr.mxu0 0.0
    %472 = vmatpush1.msra.mxu0 0.0
    %473 = vmatprep.subr.mxu0 0.0
    %474 = vmatpush1.msra.mxu0 0.0
    %475 = vmatprep.subr.mxu0 0.0
    %476 = vmatpush1.msra.mxu0 0.0
    %477 = vmatprep.subr.mxu0 0.0
    %478 = vmatpush1.msra.mxu0 0.0
    %479 = vmatprep.subr.mxu0 0.0
    %480 = vmatpush1.msra.mxu0 0.0
    %481 = vmatprep.subr.mxu0 0.0
    %482 = vmatpush1.msra.mxu0 0.0
    %483 = vmatprep.subr.mxu0 0.0
    %484 = vmatpush1.msra.mxu0 0.0
    %485 = vmatprep.subr.mxu0 0.0
    %486 = vmatpush1.msra.mxu0 0.0
    %487 = vmatprep.subr.mxu0 0.0
    %488 = vmatpush1.msra.mxu0 0.0
    %489 = vmatprep.subr.mxu0 0.0
    %490 = vmatpush1.msra.mxu0 0.0
    %491 = vmatprep.subr.mxu0 0.0
    %492 = vmatpush1.msra.mxu0 0.0
    %493 = vmatprep.subr.mxu0 0.0
    %494 = vmatpush1.msra.mxu0 0.0
    %495 = vmatprep.subr.mxu0 0.0
    %496 = vmatpush1.msra.mxu0 0.0
    %497 = vmatprep.subr.mxu0 0.0
    %498 = vmatpush1.msra.mxu0 0.0
    %499 = vmatprep.subr.mxu0 0.0
    %500 = vmatpush1.msra.mxu0 0.0
    %501 = vmatprep.subr.mxu0 0.0
    %502 = vmatpush1.msra.mxu0 0.0
    %503 = vmatprep.mubr.f32.mxu0 0.0
    %504 = vmatmul.mubr.f32.gmra.mrb[0].mxu0 %v416
    %v505 = vpop.f32.mrb[0].mxu0
    %v506 = vadd.f32 %v384, %v505
    %v507 = vpop.f32.mrb[0].mxu0
    %508 = vmatprep.mubr.f32.mxu0 0.0
    %509 = vmatmul.mubr.f32.gmra.mrb[0].mxu0 %v419
    %v510 = vpop.f32.mrb[0].mxu0
    %v511 = vadd.f32 %v388, %v510
    %v512 = vpop.f32.mrb[0].mxu0
    %513 = vmatprep.mubr.f32.mxu0 0.0
    %514 = vmatmul.mubr.f32.gmra.mrb[0].mxu0 %v422
    %v515 = vpop.f32.mrb[0].mxu0
    %v516 = vadd.f32 %v392, %v515
    %v517 = vpop.f32.mrb[0].mxu0
    %518 = vmatprep.mubr.f32.mxu0 0.0
    %519 = vmatmul.mubr.f32.gmra.mrb[0].mxu0 %v425
    %v520 = vpop.f32.mrb[0].mxu0
    %v521 = vadd.f32 %v396, %v520
    %v522 = vpop.f32.mrb[0].mxu0
    %523 = vmatprep.mubr.f32.mxu0 0.0
    %524 = vmatmul.mubr.f32.gmra.mrb[0].mxu0 %v428
    %v525 = vpop.f32.mrb[0].mxu0
    %v526 = vadd.f32 %v400, %v525
    %v527 = vpop.f32.mrb[0].mxu0
    %528 = vmatprep.mubr.f32.mxu0 0.0
    %529 = vmatmul.mubr.f32.gmra.mrb[0].mxu0 %v431
    %v530 = vpop.f32.mrb[0].mxu0
    %v531 = vadd.f32 %v404, %v530
    %v532 = vpop.f32.mrb[0].mxu0
    %533 = vmatprep.mubr.f32.mxu0 0.0
    %534 = vmatmul.mubr.f32.gmra.mrb[0].mxu0 %v434
    %v535 = vpop.f32.mrb[0].mxu0
    %v536 = vadd.f32 %v408, %v535
    %v537 = vpop.f32.mrb[0].mxu0
    %538 = vmatprep.mubr.f32.mxu0 0.0
    %539 = vmatmul.mubr.f32.gmra.mrb[0].mxu0 %v437
    %v540 = vpop.f32.mrb[0].mxu0
    %v541 = vadd.f32 %v412, %v540
    %v542 = vpop.f32.mrb[0].mxu0
    %543 = vdwg.mxu0
    %v544 = vmax.f32 %v506, 0.0
    %v545 = vmax.f32 %v511, 0.0
    %v546 = vmax.f32 %v516, 0.0
    %v547 = vmax.f32 %v521, 0.0
    %v548 = vmax.f32 %v526, 0.0
    %v549 = vmax.f32 %v531, 0.0
    %v550 = vmax.f32 %v536, 0.0
    %v551 = vmax.f32 %v541, 0.0
    %s552 = scalar_lea.vmem %s4, 64
    %v553 = vld [vmem:[%s552] sm:$0xff]
    %v554 = vld [vmem:[%s552 + $0x8] sm:$0xff]
    %v555 = vld [vmem:[%s552 + $0x10] sm:$0xff]
    %v556 = vld [vmem:[%s552 + $0x18] sm:$0xff]
    %v557 = vld [vmem:[%s552 + $0x20] sm:$0xff]
    %v558 = vld [vmem:[%s552 + $0x28] sm:$0xff]
    %v559 = vld [vmem:[%s552 + $0x30] sm:$0xff]
    %v560 = vld [vmem:[%s552 + $0x38] sm:$0xff]
    %561 = vset.pattern.permute.xlu0 2
    %562 = vperm.xlu0 %561, %v30
    %v563 = vpop.permute.xlu0 %562
    %565 = vset.pattern.permute.xlu0 2
    %566 = vperm.xlu0 %565, %v31
    %v567 = vpop.permute.xlu0 %566
    %569 = vset.pattern.permute.xlu0 2
    %570 = vperm.xlu0 %569, %v32
    %v571 = vpop.permute.xlu0 %570
    %573 = vset.pattern.permute.xlu0 2
    %574 = vperm.xlu0 %573, %v33
    %v575 = vpop.permute.xlu0 %574
    %577 = vset.pattern.permute.xlu0 2
    %578 = vperm.xlu0 %577, %v34
    %v579 = vpop.permute.xlu0 %578
    %581 = vset.pattern.permute.xlu0 2
    %582 = vperm.xlu0 %581, %v35
    %v583 = vpop.permute.xlu0 %582
    %585 = vset.pattern.permute.xlu0 2
    %586 = vperm.xlu0 %585, %v36
    %v587 = vpop.permute.xlu0 %586
    %589 = vset.pattern.permute.xlu0 2
    %590 = vperm.xlu0 %589, %v37
    %v591 = vpop.permute.xlu0 %590
    %v594 = vsel %vm414, %v553, 0
    %v597 = vsel %vm414, %v554, 0
    %v600 = vsel %vm414, %v555, 0
    %v603 = vsel %vm414, %v556, 0
    %v606 = vsel %vm414, %v557, 0
    %v609 = vsel %vm414, %v558, 0
    %v612 = vsel %vm414, %v559, 0
    %v615 = vsel %vm414, %v560, 0
    %617 = vmatprep.subr.mxu0 0.0
    %618 = vmatpush1.msra.mxu0 %v544
    %619 = vmatprep.subr.mxu0 0.0
    %620 = vmatpush1.msra.mxu0 %v545
    %621 = vmatprep.subr.mxu0 0.0
    %622 = vmatpush1.msra.mxu0 %v546
    %623 = vmatprep.subr.mxu0 0.0
    %624 = vmatpush1.msra.mxu0 %v547
    %625 = vmatprep.subr.mxu0 0.0
    %626 = vmatpush1.msra.mxu0 %v548
    %627 = vmatprep.subr.mxu0 0.0
    %628 = vmatpush1.msra.mxu0 %v549
    %629 = vmatprep.subr.mxu0 0.0
    %630 = vmatpush1.msra.mxu0 %v550
    %631 = vmatprep.subr.mxu0 0.0
    %632 = vmatpush1.msra.mxu0 %v551
    %633 = vmatprep.subr.mxu0 0.0
    %634 = vmatpush1.msra.mxu0 0.0
    %635 = vmatprep.subr.mxu0 0.0
    %636 = vmatpush1.msra.mxu0 0.0
    %637 = vmatprep.subr.mxu0 0.0
    %638 = vmatpush1.msra.mxu0 0.0
    %639 = vmatprep.subr.mxu0 0.0
    %640 = vmatpush1.msra.mxu0 0.0
    %641 = vmatprep.subr.mxu0 0.0
    %642 = vmatpush1.msra.mxu0 0.0
    %643 = vmatprep.subr.mxu0 0.0
    %644 = vmatpush1.msra.mxu0 0.0
    %645 = vmatprep.subr.mxu0 0.0
    %646 = vmatpush1.msra.mxu0 0.0
    %647 = vmatprep.subr.mxu0 0.0
    %648 = vmatpush1.msra.mxu0 0.0
    %649 = vmatprep.subr.mxu0 0.0
    %650 = vmatpush1.msra.mxu0 0.0
    %651 = vmatprep.subr.mxu0 0.0
    %652 = vmatpush1.msra.mxu0 0.0
    %653 = vmatprep.subr.mxu0 0.0
    %654 = vmatpush1.msra.mxu0 0.0
    %655 = vmatprep.subr.mxu0 0.0
    %656 = vmatpush1.msra.mxu0 0.0
    %657 = vmatprep.subr.mxu0 0.0
    %658 = vmatpush1.msra.mxu0 0.0
    %659 = vmatprep.subr.mxu0 0.0
    %660 = vmatpush1.msra.mxu0 0.0
    %661 = vmatprep.subr.mxu0 0.0
    %662 = vmatpush1.msra.mxu0 0.0
    %663 = vmatprep.subr.mxu0 0.0
    %664 = vmatpush1.msra.mxu0 0.0
    %665 = vmatprep.subr.mxu0 0.0
    %666 = vmatpush1.msra.mxu0 0.0
    %667 = vmatprep.subr.mxu0 0.0
    %668 = vmatpush1.msra.mxu0 0.0
    %669 = vmatprep.subr.mxu0 0.0
    %670 = vmatpush1.msra.mxu0 0.0
    %671 = vmatprep.subr.mxu0 0.0
    %672 = vmatpush1.msra.mxu0 0.0
    %673 = vmatprep.subr.mxu0 0.0
    %674 = vmatpush1.msra.mxu0 0.0
    %675 = vmatprep.subr.mxu0 0.0
    %676 = vmatpush1.msra.mxu0 0.0
    %677 = vmatprep.subr.mxu0 0.0
    %678 = vmatpush1.msra.mxu0 0.0
    %679 = vmatprep.subr.mxu0 0.0
    %680 = vmatpush1.msra.mxu0 0.0
    %681 = vmatprep.mubr.f32.mxu0 0.0
    %682 = vmatmul.mubr.f32.gmra.mrb[0].mxu0 %v594
    %v683 = vpop.f32.mrb[0].mxu0
    %v684 = vadd.f32 %v563, %v683
    %v685 = vpop.f32.mrb[0].mxu0
    %686 = vmatprep.mubr.f32.mxu0 0.0
    %687 = vmatmul.mubr.f32.gmra.mrb[0].mxu0 %v597
    %v688 = vpop.f32.mrb[0].mxu0
    %v689 = vadd.f32 %v567, %v688
    %v690 = vpop.f32.mrb[0].mxu0
    %691 = vmatprep.mubr.f32.mxu0 0.0
    %692 = vmatmul.mubr.f32.gmra.mrb[0].mxu0 %v600
    %v693 = vpop.f32.mrb[0].mxu0
    %v694 = vadd.f32 %v571, %v693
    %v695 = vpop.f32.mrb[0].mxu0
    %696 = vmatprep.mubr.f32.mxu0 0.0
    %697 = vmatmul.mubr.f32.gmra.mrb[0].mxu0 %v603
    %v698 = vpop.f32.mrb[0].mxu0
    %v699 = vadd.f32 %v575, %v698
    %v700 = vpop.f32.mrb[0].mxu0
    %701 = vmatprep.mubr.f32.mxu0 0.0
    %702 = vmatmul.mubr.f32.gmra.mrb[0].mxu0 %v606
    %v703 = vpop.f32.mrb[0].mxu0
    %v704 = vadd.f32 %v579, %v703
    %v705 = vpop.f32.mrb[0].mxu0
    %706 = vmatprep.mubr.f32.mxu0 0.0
    %707 = vmatmul.mubr.f32.gmra.mrb[0].mxu0 %v609
    %v708 = vpop.f32.mrb[0].mxu0
    %v709 = vadd.f32 %v583, %v708
    %v710 = vpop.f32.mrb[0].mxu0
    %711 = vmatprep.mubr.f32.mxu0 0.0
    %712 = vmatmul.mubr.f32.gmra.mrb[0].mxu0 %v612
    %v713 = vpop.f32.mrb[0].mxu0
    %v714 = vadd.f32 %v587, %v713
    %v715 = vpop.f32.mrb[0].mxu0
    %716 = vmatprep.mubr.f32.mxu0 0.0
    %717 = vmatmul.mubr.f32.gmra.mrb[0].mxu0 %v615
    %v718 = vpop.f32.mrb[0].mxu0
    %v719 = vadd.f32 %v591, %v718
    %v720 = vpop.f32.mrb[0].mxu0
    %721 = vdwg.mxu0
    %v722 = vmax.f32 %v684, 0.0
    %v723 = vmax.f32 %v689, 0.0
    %v724 = vmax.f32 %v694, 0.0
    %v725 = vmax.f32 %v699, 0.0
    %v726 = vmax.f32 %v704, 0.0
    %v727 = vmax.f32 %v709, 0.0
    %v728 = vmax.f32 %v714, 0.0
    %v729 = vmax.f32 %v719, 0.0
    %730 = vset.pattern.permute.xlu0 3
    %731 = vperm.xlu0 %730, %v30
    %v732 = vpop.permute.xlu0 %731
    %734 = vset.pattern.permute.xlu0 3
    %735 = vperm.xlu0 %734, %v31
    %v736 = vpop.permute.xlu0 %735
    %738 = vset.pattern.permute.xlu0 3
    %739 = vperm.xlu0 %738, %v32
    %v740 = vpop.permute.xlu0 %739
    %742 = vset.pattern.permute.xlu0 3
    %743 = vperm.xlu0 %742, %v33
    %v744 = vpop.permute.xlu0 %743
    %746 = vset.pattern.permute.xlu0 3
    %747 = vperm.xlu0 %746, %v34
    %v748 = vpop.permute.xlu0 %747
    %750 = vset.pattern.permute.xlu0 3
    %751 = vperm.xlu0 %750, %v35
    %v752 = vpop.permute.xlu0 %751
    %754 = vset.pattern.permute.xlu0 3
    %755 = vperm.xlu0 %754, %v36
    %v756 = vpop.permute.xlu0 %755
    %758 = vset.pattern.permute.xlu0 3
    %759 = vperm.xlu0 %758, %v37
    %v760 = vpop.permute.xlu0 %759
    %v762 = vmul.f32 %v722, %v732
    %v763 = vmul.f32 %v723, %v736
    %v764 = vmul.f32 %v724, %v740
    %v765 = vmul.f32 %v725, %v744
    %v766 = vmul.f32 %v726, %v748
    %v767 = vmul.f32 %v727, %v752
    %v768 = vmul.f32 %v728, %v756
    %v769 = vmul.f32 %v729, %v760
    %vm770 = vcmask 130048
    %v771 = vsel %vm770, %v762, 0.0
    %v772 = vsel %vm770, %v763, 0.0
    %v773 = vadd.f32 %v771, %v772
    %v774 = vsel %vm770, %v764, 0.0
    %v775 = vadd.f32 %v773, %v774
    %v776 = vsel %vm770, %v765, 0.0
    %v777 = vadd.f32 %v775, %v776
    %v778 = vsel %vm770, %v766, 0.0
    %v779 = vadd.f32 %v777, %v778
    %v780 = vsel %vm770, %v767, 0.0
    %v781 = vadd.f32 %v779, %v780
    %v782 = vsel %vm770, %v768, 0.0
    %v783 = vadd.f32 %v781, %v782
    %v784 = vsel %vm770, %v769, 0.0
    %v785 = vadd.f32 %v783, %v784
    %v786 = vrot.slane %v785, 4
    %v787 = vadd.f32 %v785, %v786
    %v788 = vrot.slane %v787, 2
    %v789 = vadd.f32 %v787, %v788
    %v790 = vrot.slane %v789, 1
    %v791 = vadd.f32 %v789, %v790
    %s792 = sld [smem:[#allocation2]]
    %v793 = vstv %s792
    %v794 = vadd.f32 %v791, %v793
    %vm795 = vcmask 122880
    %796 = vst.msk [vmem:[#allocation3] sm:$0x1] %vm795, %v794
    // Predicated region
    $region30: #{tpu_custom_call.1} parent=1 // pred_check
      _
    $region31: #{tpu_custom_call.1} parent=1 // pred_check_branch
      %798 = sbr.rel (0) target = $region33
    $region32: #{tpu_custom_call.1} parent=1 // pred_region
      %s800 = ssub.s32 16, 16
      %801 = vsyncadd [#allocation4], %s800
      %s803 = sshll.u32 [#allocation3], 4
      %s804 = int_to_ptr.vmem [resolvable:$true] %s803
      %806 = dma.vmem_to_hbm [thread:$0]  %s804, 16, %s7, [#allocation4]
    $region33: #{tpu_custom_call.1} parent=1 // pred_fallthru
      _
    // Predicated region
    $region34: #{tpu_custom_call.1} parent=1 // pred_check
      _
    $region35: #{tpu_custom_call.1} parent=1 // pred_check_branch
      %808 = sbr.rel (0) target = $region37
    $region36: #{tpu_custom_call.1} parent=1 // pred_region
      %809 = dma.done [#allocation4], 16
    $region37: #{tpu_custom_call.1} parent=1 // pred_fallthru
      _
    %810 = vsyncpa [#allocation4], 1

</llo_original>
